<compile_context>
chip_gen: v7x
topology: tpu7x:2x2x1
jax: 0.10.0
libtpu: 0.0.40
codegen_flags: <defaults>
</compile_context>

<pallas_src>
import functools

import jax
import jax.numpy as jnp
from jax.experimental import pallas as pl
from jax.experimental.pallas import tpu as pltpu

P_DROP = 0.3        # default dropout of Decussation
LOSS_SCALE = 0.1    # default lossScale of Decussation
LANE = 128          # lane width: pad output dim to a multiple of this


def decussation_kernel(x_ref, w_ref, b_ref, bits_ref, out_ref, loss_ref,
                       *, n_rows, d_out_real, p_drop, loss_scale):
    # Apply the 1/(1-p) keep-scale once to x (cheapest place: B x Din elems).
    keep_scale = 1.0 / (1.0 - p_drop)
    x = x_ref[...].astype(jnp.float32) * keep_scale            # (B, Din)
    w = w_ref[...].astype(jnp.float32)                         # (Din, Dpad)
    b = b_ref[...].astype(jnp.float32)                         # (1, Dpad)

    # Integer-threshold dropout: keep with prob (1-p).  One (2B, Din) draw
    # covers both independent dropout samples.
    thr = jnp.uint32(int(round(p_drop * (2.0 ** 32))))
    keep = bits_ref[...] >= thr                                # (2B, Din) bool
    x1 = jnp.where(keep[:n_rows], x, 0.0)                      # dropout draw 1
    x2 = jnp.where(keep[n_rows:], x, 0.0)                      # dropout draw 2

    # Single fused MXU push: rows [0, B) -> x1 @ W, rows [B, 2B) -> (x2-x1) @ W.
    # Since dec = x2 @ W + b and out = x1 @ W + b, the bias cancels and the
    # bottom half of the product is (dec - out) directly.
    xs = jnp.concatenate([x1, x2 - x1], axis=0)                # (2B, Din)
    y = jnp.dot(xs, w, preferred_element_type=jnp.float32)     # (2B, Dpad)

    out_ref[...] = (y[:n_rows] + b).astype(out_ref.dtype)      # (B, Dpad)

    # MSE over the REAL output columns only; padded columns of W are zero so
    # they contribute exactly 0 to the sum of squares.
    diff = y[n_rows:]                                          # dec - out
    loss_ref[0] = jnp.sum(diff * diff) * (loss_scale / (n_rows * d_out_real))
    # TODO(synk): loss.backward() (gradient side effect on the wrapped model)
    # has no forward-only Pallas equivalent; the scaled loss value is returned.


def decussation_forward(x, w, b, key, *, p_drop=P_DROP, loss_scale=LOSS_SCALE):
    B, Din = x.shape
    Dout = w.shape[1]
    Dpad = ((Dout + LANE - 1) // LANE) * LANE

    # Lane-dense layout: pad the output dimension of W / b to a multiple of 128
    # so the kernel's stores and HBM writeback are unmasked full-lane ops.
    w_pad = jnp.pad(w, ((0, 0), (0, Dpad - Dout)))
    b_pad = jnp.pad(b.reshape(1, Dout), ((0, 0), (0, Dpad - Dout)))

    # One wide random draw for both dropout masks (two (B, Din) masks).
    bits = jax.random.bits(key, (2 * B, Din), dtype=jnp.uint32)

    kernel = functools.partial(
        decussation_kernel,
        n_rows=B, d_out_real=Dout, p_drop=p_drop, loss_scale=loss_scale)

    out_pad, loss = pl.pallas_call(
        kernel,
        out_shape=(
            jax.ShapeDtypeStruct((B, Dpad), x.dtype),
            jax.ShapeDtypeStruct((1,), jnp.float32),
        ),
        in_specs=[
            pl.BlockSpec(memory_space=pltpu.MemorySpace.VMEM),  # x
            pl.BlockSpec(memory_space=pltpu.MemorySpace.VMEM),  # w (padded)
            pl.BlockSpec(memory_space=pltpu.MemorySpace.VMEM),  # b (padded)
            pl.BlockSpec(memory_space=pltpu.MemorySpace.VMEM),  # random bits
        ],
        out_specs=(
            pl.BlockSpec(memory_space=pltpu.MemorySpace.VMEM),  # out (padded)
            pl.BlockSpec(memory_space=pltpu.MemorySpace.SMEM),  # scalar loss
        ),
    )(x, w_pad, b_pad, bits)

    return out_pad[:, :Dout], loss[0]


if __name__ == "__main__":
    key = jax.random.PRNGKey(0)
    kx, kw, kb, kd = jax.random.split(key, 4)

    B, H = 8, 32                       # batch=8, hidden=32
    x = jax.random.normal(kx, (B, H), dtype=jnp.float32)
    # deterministic "Linear(H, H)" parameters of the wrapped model
    w = jax.random.normal(kw, (H, H), dtype=jnp.float32) * (1.0 / jnp.sqrt(H))
    b = jax.random.normal(kb, (1, H), dtype=jnp.float32) * 0.01

    out, loss = decussation_forward(x, w, b, kd)
    jax.block_until_ready((out, loss))

    assert out.shape == (B, H)
    assert jnp.isfinite(out).all()
    assert jnp.isfinite(loss)
    print("KERNEL_OK")
</pallas_src>

<mosaic_0001>
module attributes {stable_mosaic.version = 11 : i64} {
  func.func @decussation_kernel(%arg0: memref<8x32xf32, #tpu.memory_space<vmem>>, %arg1: memref<32x128xf32, #tpu.memory_space<vmem>>, %arg2: memref<1x128xf32, #tpu.memory_space<vmem>>, %arg3: memref<16x32xi32, #tpu.memory_space<vmem>>, %arg4: memref<8x128xf32, #tpu.memory_space<vmem>>, %arg5: memref<1xf32, #tpu.memory_space<smem>>) attributes {dimension_semantics = [], scalar_prefetch = 0 : i64, scratch_operands = 0 : i64, tpu.core_type = #tpu.core_type<tc>} {
    %c0 = arith.constant 0 : index
    %c0_0 = arith.constant 0 : index
    %0 = vector.load %arg0[%c0, %c0_0] : memref<8x32xf32, #tpu.memory_space<vmem>>, vector<8x32xf32>
    %cst = arith.constant 1.42857146 : f32
    %1 = vector.broadcast %cst : f32 to vector<8x32xf32>
    %2 = arith.mulf %0, %1 : vector<8x32xf32>
    %c0_1 = arith.constant 0 : index
    %c0_2 = arith.constant 0 : index
    %3 = vector.load %arg1[%c0_1, %c0_2] : memref<32x128xf32, #tpu.memory_space<vmem>>, vector<32x128xf32>
    %c0_3 = arith.constant 0 : index
    %c0_4 = arith.constant 0 : index
    %4 = vector.load %arg2[%c0_3, %c0_4] : memref<1x128xf32, #tpu.memory_space<vmem>>, vector<1x128xf32>
    %c0_5 = arith.constant 0 : index
    %c0_6 = arith.constant 0 : index
    %5 = vector.load %arg3[%c0_5, %c0_6] : memref<16x32xi32, #tpu.memory_space<vmem>>, vector<16x32xi32>
    %c1288490189_i32 = arith.constant 1288490189 : i32
    %6 = vector.broadcast %c1288490189_i32 : i32 to vector<16x32xi32>
    %7 = arith.cmpi uge, %5, %6 : vector<16x32xi32>
    %8 = vector.extract_strided_slice %7 {offsets = [0, 0], sizes = [8, 32], strides = [1, 1]} : vector<16x32xi1> to vector<8x32xi1>
    %cst_7 = arith.constant 0.000000e+00 : f32
    %9 = vector.broadcast %cst_7 : f32 to vector<8x32xf32>
    %10 = arith.select %8, %2, %9 : vector<8x32xi1>, vector<8x32xf32>
    %11 = vector.extract_strided_slice %7 {offsets = [8, 0], sizes = [8, 32], strides = [1, 1]} : vector<16x32xi1> to vector<8x32xi1>
    %cst_8 = arith.constant 0.000000e+00 : f32
    %12 = vector.broadcast %cst_8 : f32 to vector<8x32xf32>
    %13 = arith.select %11, %2, %12 : vector<8x32xi1>, vector<8x32xf32>
    %14 = arith.subf %13, %10 : vector<8x32xf32>
    %15 = tpu.concatenate %10, %14 in 0 : vector<8x32xf32>, vector<8x32xf32> -> vector<16x32xf32>
    %cst_9 = arith.constant dense<0.000000e+00> : vector<16x128xf32>
    %16 = tpu.matmul %15, %3, %cst_9 {dimension_numbers = #tpu.dot_dimension_numbers<[1], [0], [0], [1], [0, 0, 1, 1], [], []>} : vector<16x32xf32>, vector<32x128xf32>, vector<16x128xf32> -> vector<16x128xf32>
    %17 = vector.extract_strided_slice %16 {offsets = [0, 0], sizes = [8, 128], strides = [1, 1]} : vector<16x128xf32> to vector<8x128xf32>
    %18 = vector.broadcast %4 : vector<1x128xf32> to vector<8x128xf32>
    %19 = arith.addf %17, %18 : vector<8x128xf32>
    %c0_10 = arith.constant 0 : index
    %c0_11 = arith.constant 0 : index
    %20 = vector.load %arg4[%c0_10, %c0_11] : memref<8x128xf32, #tpu.memory_space<vmem>>, vector<8x128xf32>
    tpu.vector_store %arg4[%c0_10, %c0_11], %19 {strides = array<i32>} : memref<8x128xf32, #tpu.memory_space<vmem>>, vector<8x128xf32>,
    %21 = vector.extract_strided_slice %16 {offsets = [8, 0], sizes = [8, 128], strides = [1, 1]} : vector<16x128xf32> to vector<8x128xf32>
    %22 = arith.mulf %21, %21 : vector<8x128xf32>
    %23 = vector.shape_cast %22 : vector<8x128xf32> to vector<1x8x128xf32>
    %cst_12 = arith.constant dense<0.000000e+00> : vector<1xf32>
    %24 = vector.multi_reduction <add>, %23, %cst_12 [1, 2] : vector<1x8x128xf32> to vector<1xf32>
    %25 = vector.shape_cast %24 : vector<1xf32> to vector<1x1x1xf32>
    %26 = vector.extract %25[0, 0, 0] : f32 from vector<1x1x1xf32>
    %cst_13 = arith.constant 3.906250e-04 : f32
    %27 = arith.mulf %26, %cst_13 : f32
    %c0_14 = arith.constant 0 : index
    %28 = memref.load %arg5[%c0_14] : memref<1xf32, #tpu.memory_space<smem>>
    memref.store %27, %arg5[%c0_14] : memref<1xf32, #tpu.memory_space<smem>>
    return
  }
}

</mosaic_0001>

<llo_original>
// kernel: tpu_custom_call.1
$region0: #{tpu_custom_call.1}
  #allocation0 [shape = 'u32[]', space=smem, size = 0x4, offset = 0x4, fixed_abs, tag = 'smem constant byte address 0x4 - core index']
  #allocation1 [shape = 'u32[144,128]{1,0:T(1,128)}', space=vmem, size = 0x12000, scoped, tag = 'internal scratch']
  %s0 = inlined_call_operand.hbm [shape: f32[8,32], index: 0, kind: input, shape index: {}]
  %s1 = inlined_call_operand.hbm [shape: f32[32,128], index: 1, kind: input, shape index: {}]
  %s2 = inlined_call_operand.vmem [shape: f32[1,128], index: 2, kind: input, shape index: {}]
  %s3 = inlined_call_operand.hbm [shape: u32[16,32], index: 3, kind: input, shape index: {}]
  %s4 = inlined_call_operand.hbm [shape: f32[8,128], index: 4, kind: output, shape index: {0}]
  %s5 = inlined_call_operand.hbm [shape: f32[1], index: 5, kind: output, shape index: {1}]
  %6 = xla_tuple %s4, %s5
  %s7 = sld [smem:[#allocation0]]
  $region46: #{tpu_custom_call.1} parent=0
    _
  %s9 = ssub.s32 1, %s7
  %s10 = scalar_select 0, %s9, %s7
  $region1: #{tpu_custom_call.1} parent=0
    #allocation2 [shape = 'u8[4096]{0}', space=vmem, size = 0x1000, scoped, tag = 'input window, operand 0, single buffered']
    #allocation3 [shape = 's32[1]{0}', space=sflag, size = 0x4, scoped, tag = 'scoped memory for tpu_custom_call.1']
    #allocation4 [shape = 's32[1]{0}', space=sflag, size = 0x4, scoped, tag = 'scoped memory for tpu_custom_call.1']
    #allocation5 [shape = 's32[1]{0}', space=sflag, size = 0x4, scoped, tag = 'scoped memory for tpu_custom_call.1']
    #allocation6 [shape = 'u8[16384]{0}', space=vmem, size = 0x4000, scoped, tag = 'input window, operand 1, single buffered']
    #allocation7 [shape = 's32[1]{0}', space=sflag, size = 0x4, scoped, tag = 'scoped memory for tpu_custom_call.1']
    #allocation8 [shape = 'u8[8192]{0}', space=vmem, size = 0x2000, scoped, tag = 'input window, operand 3, single buffered']
    #allocation9 [shape = 'u8[4096]{0}', space=vmem, size = 0x1000, scoped, tag = 'output window, operand 0, single buffered']
    #allocation10 [shape = 'u8[512]{0}', space=smem, size = 0x200, scoped, tag = 'output window, operand 1, single buffered']
    %11 = vsyncpa [#allocation3], 0
    %12 = vsyncpa [#allocation7], 0
    %13 = vsyncpa [#allocation4], 0
    %14 = vsyncpa [#allocation5], 0
    // Predicated region
    $region2: #{tpu_custom_call.1} parent=1 // pred_check
      _
    $region3: #{tpu_custom_call.1} parent=1 // pred_check_branch
      %16 = sbr.rel (0) target = $region5
    $region4: #{tpu_custom_call.1} parent=1 // pred_region
      %s18 = ssub.s32 128, 128
      %19 = vsyncadd [#allocation3], %s18
      %s21 = sshll.u32 [#allocation2], 4
      %s22 = int_to_ptr.vmem [resolvable:$true] %s21
      %24 = dma.hbm_to_vmem [thread:$0]  %s0, 128, %s22, [#allocation3]
    $region5: #{tpu_custom_call.1} parent=1 // pred_fallthru
      _
    // Predicated region
    $region6: #{tpu_custom_call.1} parent=1 // pred_check
      _
    $region7: #{tpu_custom_call.1} parent=1 // pred_check_branch
      %26 = sbr.rel (0) target = $region9
    $region8: #{tpu_custom_call.1} parent=1 // pred_region
      %s28 = ssub.s32 512, 512
      %29 = vsyncadd [#allocation7], %s28
      %s30 = sshll.u32 [#allocation6], 4
      %s31 = int_to_ptr.vmem [resolvable:$true] %s30
      %36 = dma.hbm_to_vmem [thread:$0]  %s1, 512, %s31, [#allocation7], 128, 128, 8
    $region9: #{tpu_custom_call.1} parent=1 // pred_fallthru
      _
    // Predicated region
    $region10: #{tpu_custom_call.1} parent=1 // pred_check
      _
    $region11: #{tpu_custom_call.1} parent=1 // pred_check_branch
      %38 = sbr.rel (0) target = $region13
    $region12: #{tpu_custom_call.1} parent=1 // pred_region
      _
    $region13: #{tpu_custom_call.1} parent=1 // pred_fallthru
      _
    // Predicated region
    $region14: #{tpu_custom_call.1} parent=1 // pred_check
      _
    $region15: #{tpu_custom_call.1} parent=1 // pred_check_branch
      %40 = sbr.rel (0) target = $region17
    $region16: #{tpu_custom_call.1} parent=1 // pred_region
      %s42 = ssub.s32 256, 256
      %43 = vsyncadd [#allocation7], %s42
      %s44 = sshll.u32 [#allocation8], 4
      %s45 = int_to_ptr.vmem [resolvable:$true] %s44
      %50 = dma.hbm_to_vmem [thread:$0]  %s3, 256, %s45, [#allocation7], 128, 128, 8
    $region17: #{tpu_custom_call.1} parent=1 // pred_fallthru
      _
    // Predicated region
    $region18: #{tpu_custom_call.1} parent=1 // pred_check
      _
    $region19: #{tpu_custom_call.1} parent=1 // pred_check_branch
      %52 = sbr.rel (0) target = $region21
    $region20: #{tpu_custom_call.1} parent=1 // pred_region
      %53 = dma.done [#allocation3], 128
    $region21: #{tpu_custom_call.1} parent=1 // pred_fallthru
      _
    // Predicated region
    $region22: #{tpu_custom_call.1} parent=1 // pred_check
      _
    $region23: #{tpu_custom_call.1} parent=1 // pred_check_branch
      %55 = sbr.rel (0) target = $region25
    $region24: #{tpu_custom_call.1} parent=1 // pred_region
      %56 = dma.done [#allocation7], 512
    $region25: #{tpu_custom_call.1} parent=1 // pred_fallthru
      _
    // Predicated region
    $region26: #{tpu_custom_call.1} parent=1 // pred_check
      _
    $region27: #{tpu_custom_call.1} parent=1 // pred_check_branch
      %58 = sbr.rel (0) target = $region29
    $region28: #{tpu_custom_call.1} parent=1 // pred_region
      %59 = dma.done [#allocation7], 256
    $region29: #{tpu_custom_call.1} parent=1 // pred_fallthru
      _
    %v60 = vld [vmem:[#allocation2] sm:$0xff]
    %v61 = vmul.f32 %v60, 1.4285715
    %v62 = vld [vmem:[#allocation6] sm:$0xff]
    %v63 = vld [vmem:[#allocation6 + $0x8] sm:$0xff]
    %v64 = vld [vmem:[#allocation6 + $0x10] sm:$0xff]
    %v65 = vld [vmem:[#allocation6 + $0x18] sm:$0xff]
    %v66 = vld [vmem:[%s2] sm:$0x1]
    %v67 = vld [vmem:[#allocation8] sm:$0xff]
    %v68 = vld [vmem:[#allocation8 + $0x8] sm:$0xff]
    %vm69 = vcmp.ge.u32.totalorder %v67, 1288490189
    %vm70 = vcmp.ge.u32.totalorder %v68, 1288490189
    %v71 = vsel %vm69, %v61, 0.0
    %v72 = vsel %vm70, %v61, 0.0
    %v73 = vsub.f32 %v72, %v71
    %vm74 = vcmask 261120
    %v76 = vsel %vm74, %v71, 0
    %v79 = vsel %vm74, %v73, 0
    %81 = vmatprep.subr.mxu0 0.0
    %82 = vmatpush1.msra.mxu0 %v62
    %83 = vmatprep.subr.mxu0 0.0
    %84 = vmatpush1.msra.mxu0 %v63
    %85 = vmatprep.subr.mxu0 0.0
    %86 = vmatpush1.msra.mxu0 %v64
    %87 = vmatprep.subr.mxu0 0.0
    %88 = vmatpush1.msra.mxu0 %v65
    %89 = vmatprep.subr.mxu0 0.0
    %90 = vmatpush1.msra.mxu0 0.0
    %91 = vmatprep.subr.mxu0 0.0
    %92 = vmatpush1.msra.mxu0 0.0
    %93 = vmatprep.subr.mxu0 0.0
    %94 = vmatpush1.msra.mxu0 0.0
    %95 = vmatprep.subr.mxu0 0.0
    %96 = vmatpush1.msra.mxu0 0.0
    %97 = vmatprep.subr.mxu0 0.0
    %98 = vmatpush1.msra.mxu0 0.0
    %99 = vmatprep.subr.mxu0 0.0
    %100 = vmatpush1.msra.mxu0 0.0
    %101 = vmatprep.subr.mxu0 0.0
    %102 = vmatpush1.msra.mxu0 0.0
    %103 = vmatprep.subr.mxu0 0.0
    %104 = vmatpush1.msra.mxu0 0.0
    %105 = vmatprep.subr.mxu0 0.0
    %106 = vmatpush1.msra.mxu0 0.0
    %107 = vmatprep.subr.mxu0 0.0
    %108 = vmatpush1.msra.mxu0 0.0
    %109 = vmatprep.subr.mxu0 0.0
    %110 = vmatpush1.msra.mxu0 0.0
    %111 = vmatprep.subr.mxu0 0.0
    %112 = vmatpush1.msra.mxu0 0.0
    %113 = vmatprep.subr.mxu0 0.0
    %114 = vmatpush1.msra.mxu0 0.0
    %115 = vmatprep.subr.mxu0 0.0
    %116 = vmatpush1.msra.mxu0 0.0
    %117 = vmatprep.subr.mxu0 0.0
    %118 = vmatpush1.msra.mxu0 0.0
    %119 = vmatprep.subr.mxu0 0.0
    %120 = vmatpush1.msra.mxu0 0.0
    %121 = vmatprep.subr.mxu0 0.0
    %122 = vmatpush1.msra.mxu0 0.0
    %123 = vmatprep.subr.mxu0 0.0
    %124 = vmatpush1.msra.mxu0 0.0
    %125 = vmatprep.subr.mxu0 0.0
    %126 = vmatpush1.msra.mxu0 0.0
    %127 = vmatprep.subr.mxu0 0.0
    %128 = vmatpush1.msra.mxu0 0.0
    %129 = vmatprep.subr.mxu0 0.0
    %130 = vmatpush1.msra.mxu0 0.0
    %131 = vmatprep.subr.mxu0 0.0
    %132 = vmatpush1.msra.mxu0 0.0
    %133 = vmatprep.subr.mxu0 0.0
    %134 = vmatpush1.msra.mxu0 0.0
    %135 = vmatprep.subr.mxu0 0.0
    %136 = vmatpush1.msra.mxu0 0.0
    %137 = vmatprep.subr.mxu0 0.0
    %138 = vmatpush1.msra.mxu0 0.0
    %139 = vmatprep.subr.mxu0 0.0
    %140 = vmatpush1.msra.mxu0 0.0
    %141 = vmatprep.subr.mxu0 0.0
    %142 = vmatpush1.msra.mxu0 0.0
    %143 = vmatprep.subr.mxu0 0.0
    %144 = vmatpush1.msra.mxu0 0.0
    %145 = vmatprep.mubr.f32.mxu0 0.0
    %146 = vmatmul.mubr.f32.gmra.mrb[0].mxu0 %v76
    %v147 = vpop.f32.mrb[0].mxu0
    %v148 = vadd.f32 0.0, %v147
    %v149 = vpop.f32.mrb[0].mxu0
    %150 = vmatprep.mubr.f32.mxu0 0.0
    %151 = vmatmul.mubr.f32.gmra.mrb[0].mxu0 %v79
    %v152 = vpop.f32.mrb[0].mxu0
    %v153 = vadd.f32 0.0, %v152
    %v154 = vpop.f32.mrb[0].mxu0
    %155 = vdwg.mxu0
    %v157 = vlaneseq
    %v158 = vshrl.u32 %v157, 7
    %v159 = vsub.s32 0, %v158
    %v160 = vrot.slane %v66, %v159
    %v162 = vadd.f32 %v148, %v160
    %163 = vst [vmem:[#allocation9] sm:$0xff] %v162
    %v164 = vmul.f32 %v153, %v153
    %165 = vadd.xlane.f32.xlu0 %v164
    %v166 = vpop.xlane.xlu0 %165
    %v167 = vrot.slane %v166, 4
    %v168 = vadd.f32 %v166, %v167
    %v169 = vrot.slane %v168, 2
    %v170 = vadd.f32 %v168, %v169
    %v171 = vrot.slane %v170, 1
    %v172 = vadd.f32 %v170, %v171
    %s173 = vtos %v172
    %s174 = smul.f32 %s173, 0.000390625
    %s175 = scalar_lea.smem [#allocation10], 0
    %176 = sst [smem:[%s175]] %s174
    // Predicated region
    $region30: #{tpu_custom_call.1} parent=1 // pred_check
      _
    $region31: #{tpu_custom_call.1} parent=1 // pred_check_branch
      %178 = sbr.rel (0) target = $region33
    $region32: #{tpu_custom_call.1} parent=1 // pred_region
      %s180 = ssub.s32 128, 128
      %181 = vsyncadd [#allocation4], %s180
      %s183 = sshll.u32 [#allocation9], 4
      %s184 = int_to_ptr.vmem [resolvable:$true] %s183
      %186 = dma.vmem_to_hbm [thread:$0]  %s184, 128, %s4, [#allocation4]
    $region33: #{tpu_custom_call.1} parent=1 // pred_fallthru
      _
    // Predicated region
    $region34: #{tpu_custom_call.1} parent=1 // pred_check
      _
    $region35: #{tpu_custom_call.1} parent=1 // pred_check_branch
      %188 = sbr.rel (0) target = $region37
    $region36: #{tpu_custom_call.1} parent=1 // pred_region
      %s190 = ssub.s32 16, 16
      %191 = vsyncadd [#allocation5], %s190
      %194 = dma.smem_to_hbm [#allocation10], 16, %s5, [#allocation5]
    $region37: #{tpu_custom_call.1} parent=1 // pred_fallthru
      _
    // Predicated region
    $region38: #{tpu_custom_call.1} parent=1 // pred_check
      _
    $region39: #{tpu_custom_call.1} parent=1 // pred_check_branch
      %196 = sbr.rel (0) target = $region41
    $region40: #{tpu_custom_call.1} parent=1 // pred_region
      %197 = dma.done [#allocation4], 128
    $region41: #{tpu_custom_call.1} parent=1 // pred_fallthru
      _
    // Predicated region
    $region42: #{tpu_custom_call.1} parent=1 // pred_check
      _
    $region43: #{tpu_custom_call.1} parent=1 // pred_check_branch
      %199 = sbr.rel (0) target = $region45
    $region44: #{tpu_custom_call.1} parent=1 // pred_region
      %200 = dma.done [#allocation5], 16
    $region45: #{tpu_custom_call.1} parent=1 // pred_fallthru
      _
    %201 = sfence
    %202 = vsyncpa [#allocation3], 1
    %203 = vsyncpa [#allocation7], 1
    %204 = vsyncpa [#allocation4], 1
    %205 = vsyncpa [#allocation5], 1

</llo_original>
